<compile_context>
chip_gen: v7x
topology: tpu7x:2x2x1
jax: 0.10.0
libtpu: 0.0.40
codegen_flags: <defaults>
</compile_context>

<pallas_src>
import jax
import jax.numpy as jnp
from jax.experimental import pallas as pl
from jax.experimental.pallas import tpu as pltpu


def _pad_up(x: int, m: int) -> int:
    return -(-x // m) * m


def _sublane_mult(dtype) -> int:
    # f32 -> 8 sublanes, bf16/f16 -> 16, int8/fp8 -> 32 (sub-32-bit packs sublanes).
    isz = jnp.dtype(dtype).itemsize
    return max(8, 32 // max(isz, 1))


# ---------------------------------------------------------------------------
# Primary kernel: 2-D (N, C*H*W) layout, N on sublanes, flattened CHW on lanes.
# ---------------------------------------------------------------------------
def _make_cat2d_kernel(split: int):
    def kernel(p_ref, sil_ref, pose_ref, out_ref):
        p = p_ref[0]  # SMEM scalar parameter
        scaled = sil_ref[...].astype(jnp.float32) * p
        # Two lane-dense stores (split = C1*H*W, a multiple of 128 in common cases).
        out_ref[:, :split] = scaled.astype(out_ref.dtype)
        out_ref[:, split:] = pose_ref[...].astype(out_ref.dtype)
    return kernel


# ---------------------------------------------------------------------------
# Fallback kernel: 3-D (N, C, H*W) layout with lane tiling, for the rare case
# where a single sample's flattened C*H*W does not fit the VMEM budget.
# ---------------------------------------------------------------------------
def _make_cat3d_kernel(c_sil: int):
    def kernel(p_ref, sil_ref, pose_ref, out_ref):
        p = p_ref[0]
        scaled = sil_ref[...].astype(jnp.float32) * p
        out_ref[:, :c_sil, :] = scaled.astype(out_ref.dtype)
        out_ref[:, c_sil:, :] = pose_ref[...].astype(out_ref.dtype)
    return kernel


def cat_sil_pose(sil: jax.Array, pose: jax.Array, p: jax.Array,
                 *, vmem_budget_bytes: int = 12 << 20) -> jax.Array:
    """sil: (N, C1, H, W), pose: (N, C2, H, W), p: (1,) -> (N, C1+C2, H, W)."""
    assert sil.ndim == 4 and pose.ndim == 4
    n, c1, h, w = sil.shape
    n2, c2, h2, w2 = pose.shape
    assert (n, h, w) == (n2, h2, w2), "sil / pose must match on N, H, W"

    L = h * w
    c_out = c1 + c2
    # Matches PyTorch: f32 parameter promotes sil * p; torch.cat promotes result.
    out_dtype = jnp.result_type(sil.dtype, p.dtype, pose.dtype)

    isz_s = jnp.dtype(sil.dtype).itemsize
    isz_p = jnp.dtype(pose.dtype).itemsize
    isz_o = jnp.dtype(out_dtype).itemsize
    len_s, len_p, len_o = c1 * L, c2 * L, c_out * L

    cost = pl.CostEstimate(
        flops=n * c1 * L,
        transcendentals=0,
        bytes_accessed=n * (len_s * isz_s + len_p * isz_p + len_o * isz_o),
    )
    p32 = p.reshape((1,)).astype(jnp.float32)

    sub = max(_sublane_mult(sil.dtype), _sublane_mult(pose.dtype),
              _sublane_mult(out_dtype))
    # Padded bytes for one sublane group (`sub` rows) of all three operands,
    # double-buffered (x2) by the Pallas pipeline.
    row_group_bytes = 2 * sub * (_pad_up(len_s, 128) * isz_s
                                 + _pad_up(len_p, 128) * isz_p
                                 + _pad_up(len_o, 128) * isz_o)

    if row_group_bytes <= vmem_budget_bytes:
        # ---------------- 2-D primary path ----------------
        if n <= sub:
            tn = n  # full extent (allowed even if not a multiple of 8)
        else:
            groups = max(1, vmem_budget_bytes // row_group_bytes)
            tn = min(groups * sub, _pad_up(n, sub))
            if tn >= n:
                tn = n
                # Expose >= 2 parallel grid steps for v7x's two TensorCores.
                if n >= 2 * sub:
                    tn = _pad_up(-(-n // 2), sub)

        sil2 = sil.reshape(n, len_s)
        pose2 = pose.reshape(n, len_p)
        out2 = pl.pallas_call(
            _make_cat2d_kernel(len_s),
            out_shape=jax.ShapeDtypeStruct((n, len_o), out_dtype),
            grid=(pl.cdiv(n, tn),),
            in_specs=[
                pl.BlockSpec(memory_space=pltpu.MemorySpace.SMEM),
                pl.BlockSpec((tn, len_s), lambda ni: (ni, 0)),
                pl.BlockSpec((tn, len_p), lambda ni: (ni, 0)),
            ],
            out_specs=pl.BlockSpec((tn, len_o), lambda ni: (ni, 0)),
            compiler_params=pltpu.CompilerParams(
                dimension_semantics=("parallel",)),
            cost_estimate=cost,
        )(p32, sil2, pose2)
        return out2.reshape(n, c_out, h, w)

    # ---------------- 3-D fallback path (huge per-sample H*W) ----------------
    per_lane_bytes = 2 * (_pad_up(c1, _sublane_mult(sil.dtype)) * isz_s
                          + _pad_up(c2, _sublane_mult(pose.dtype)) * isz_p
                          + _pad_up(c_out, _sublane_mult(out_dtype)) * isz_o)
    max_tl = max(1, vmem_budget_bytes // per_lane_bytes)
    tl = L if L <= max_tl else max(128, (max_tl // 128) * 128)

    sil3 = sil.reshape(n, c1, L)
    pose3 = pose.reshape(n, c2, L)
    out3 = pl.pallas_call(
        _make_cat3d_kernel(c1),
        out_shape=jax.ShapeDtypeStruct((n, c_out, L), out_dtype),
        grid=(n, pl.cdiv(L, tl)),
        in_specs=[
            pl.BlockSpec(memory_space=pltpu.MemorySpace.SMEM),
            pl.BlockSpec((1, c1, tl), lambda ni, li: (ni, 0, li)),
            pl.BlockSpec((1, c2, tl), lambda ni, li: (ni, 0, li)),
        ],
        out_specs=pl.BlockSpec((1, c_out, tl), lambda ni, li: (ni, 0, li)),
        compiler_params=pltpu.CompilerParams(
            dimension_semantics=("parallel", "parallel")),
        cost_estimate=cost,
    )(p32, sil3, pose3)
    return out3.reshape(n, c_out, h, w)


if __name__ == "__main__":
    key = jax.random.PRNGKey(0)
    k1, k2, k3, k4 = jax.random.split(key, 4)

    # Parameter init matches nn.Parameter(torch.ones(1) * p) with p=5.
    p_param = jnp.ones((1,), dtype=jnp.float32) * 5.0

    def reference(sil, pose, p):
        return jnp.concatenate([sil * p[0], pose], axis=1)

    # Test A: primary 2-D path, small demo shapes (single grid step).
    N, C1, C2, H, W = 2, 4, 3, 16, 16
    sil = jax.random.normal(k1, (N, C1, H, W), dtype=jnp.float32)
    pose = jax.random.normal(k2, (N, C2, H, W), dtype=jnp.float32)
    out = jax.block_until_ready(cat_sil_pose(sil, pose, p_param))
    assert out.shape == (N, C1 + C2, H, W)
    assert jnp.array_equal(out, reference(sil, pose, p_param)), "mismatch (2-D path)"

    # Test B: multi-step 2-D path with a ragged trailing N block (tn=8, N=18).
    Nb = 18
    sil_b = jax.random.normal(k3, (Nb, C1, H, W), dtype=jnp.float32)
    pose_b = jax.random.normal(k4, (Nb, C2, H, W), dtype=jnp.float32)
    out_b = jax.block_until_ready(
        cat_sil_pose(sil_b, pose_b, p_param, vmem_budget_bytes=300 * 1024))
    assert jnp.array_equal(out_b, reference(sil_b, pose_b, p_param)), "mismatch (2-D ragged N)"

    # Test C: 3-D lane-tiled fallback (forced via tiny budget), ragged lane tail
    # (H*W = 320 is not a multiple of the 128-lane tile).
    Wc = 20
    sil_c = jax.random.normal(k1, (3, C1, H, Wc), dtype=jnp.float32)
    pose_c = jax.random.normal(k2, (3, C2, H, Wc), dtype=jnp.float32)
    out_c = jax.block_until_ready(
        cat_sil_pose(sil_c, pose_c, p_param, vmem_budget_bytes=16 * 1024))
    assert jnp.array_equal(out_c, reference(sil_c, pose_c, p_param)), "mismatch (3-D fallback)"

    print("KERNEL_OK")
</pallas_src>

<mosaic_0001>
module attributes {stable_mosaic.version = 11 : i64} {
  func.func @kernel(%arg0: i32, %arg1: memref<1xf32, #tpu.memory_space<smem>>, %arg2: memref<2x1024xf32, #tpu.memory_space<vmem>>, %arg3: memref<2x768xf32, #tpu.memory_space<vmem>>, %arg4: memref<2x1792xf32, #tpu.memory_space<vmem>>) attributes {dimension_semantics = [#tpu.dimension_semantics<parallel>], iteration_bounds = array<i64: 1>, scalar_prefetch = 0 : i64, scratch_operands = 0 : i64, tpu.core_type = #tpu.core_type<tc>, window_params = [{transform_indices = @transform_0, window_bounds = array<i64: 1>}, {transform_indices = @transform_1, window_bounds = array<i64: 2, 1024>}, {transform_indices = @transform_2, window_bounds = array<i64: 2, 768>}, {transform_indices = @transform_3, window_bounds = array<i64: 2, 1792>}]} {
    %c0 = arith.constant 0 : index
    %0 = memref.load %arg1[%c0] : memref<1xf32, #tpu.memory_space<smem>>
    %c0_0 = arith.constant 0 : index
    %c0_1 = arith.constant 0 : index
    %1 = vector.load %arg2[%c0_0, %c0_1] : memref<2x1024xf32, #tpu.memory_space<vmem>>, vector<2x1024xf32>
    %2 = vector.broadcast %0 : f32 to vector<2x1024xf32>
    %3 = arith.mulf %1, %2 : vector<2x1024xf32>
    %c0_2 = arith.constant 0 : index
    %c0_3 = arith.constant 0 : index
    %4 = vector.load %arg4[%c0_2, %c0_3] : memref<2x1792xf32, #tpu.memory_space<vmem>>, vector<2x1024xf32>
    tpu.vector_store %arg4[%c0_2, %c0_3], %3 {strides = array<i32>} : memref<2x1792xf32, #tpu.memory_space<vmem>>, vector<2x1024xf32>,
    %c0_4 = arith.constant 0 : index
    %c0_5 = arith.constant 0 : index
    %5 = vector.load %arg3[%c0_4, %c0_5] : memref<2x768xf32, #tpu.memory_space<vmem>>, vector<2x768xf32>
    %c0_6 = arith.constant 0 : index
    %c1024 = arith.constant 1024 : index
    %6 = vector.load %arg4[%c0_6, %c1024] : memref<2x1792xf32, #tpu.memory_space<vmem>>, vector<2x768xf32>
    tpu.vector_store %arg4[%c0_6, %c1024], %5 {strides = array<i32>} : memref<2x1792xf32, #tpu.memory_space<vmem>>, vector<2x768xf32>,
    return
  }
  func.func @transform_0(%arg0: i32) -> i32 {
    %c0_i32 = arith.constant 0 : i32
    %c0_i32_0 = arith.constant 0 : i32
    return %c0_i32 : i32
  }
  func.func @transform_1(%arg0: i32) -> (i32, i32) {
    %c0_i32 = arith.constant 0 : i32
    %c0_i32_0 = arith.constant 0 : i32
    return %arg0, %c0_i32 : i32, i32
  }
  func.func @transform_2(%arg0: i32) -> (i32, i32) {
    %c0_i32 = arith.constant 0 : i32
    %c0_i32_0 = arith.constant 0 : i32
    return %arg0, %c0_i32 : i32, i32
  }
  func.func @transform_3(%arg0: i32) -> (i32, i32) {
    %c0_i32 = arith.constant 0 : i32
    %c0_i32_0 = arith.constant 0 : i32
    return %arg0, %c0_i32 : i32, i32
  }
}

</mosaic_0001>

<llo_original>
// kernel: tpu_custom_call.1
$region0: #{tpu_custom_call.1}
  #allocation0 [shape = 'u32[]', space=smem, size = 0x4, offset = 0x4, fixed_abs, tag = 'smem constant byte address 0x4 - core index']
  #allocation1 [shape = 'u32[144,128]{1,0:T(1,128)}', space=vmem, size = 0x12000, scoped, tag = 'internal scratch']
  #allocation2 [shape = 'f32[1]{0:T(128)S(6)}', space=smem, size = 0x200, scoped, tag = 'scoped memory for tpu_custom_call.1']
  %s0 = inlined_call_operand.<no memory space> [shape: f32[1], index: 0, kind: input, shape index: {}]
  %s1 = inlined_call_operand.hbm [shape: f32[2,1024], index: 1, kind: input, shape index: {}]
  %s2 = inlined_call_operand.hbm [shape: f32[2,768], index: 2, kind: input, shape index: {}]
  %s3 = inlined_call_operand.hbm [shape: f32[2,1792], index: 3, kind: output, shape index: {}]
  %s4 = sld [smem:[#allocation0]]
  $region30: #{tpu_custom_call.1} parent=0
    _
  %s6 = ssub.s32 1, %s4
  %s7 = scalar_select 0, %s6, %s4
  %8 = sst [smem:[#allocation2]] %s0
  $region1: #{tpu_custom_call.1} parent=0
    #allocation3 [shape = 'u8[8192]{0}', space=vmem, size = 0x2000, scoped, tag = 'input window, operand 1, single buffered']
    #allocation4 [shape = 's32[1]{0}', space=sflag, size = 0x4, scoped, tag = 'scoped memory for tpu_custom_call.1']
    #allocation5 [shape = 's32[1]{0}', space=sflag, size = 0x4, scoped, tag = 'scoped memory for tpu_custom_call.1']
    #allocation6 [shape = 'u8[6144]{0}', space=vmem, size = 0x1800, scoped, tag = 'input window, operand 2, single buffered']
    #allocation7 [shape = 's32[1]{0}', space=sflag, size = 0x4, scoped, tag = 'scoped memory for tpu_custom_call.1']
    #allocation8 [shape = 'u8[14336]{0}', space=vmem, size = 0x3800, scoped, tag = 'output window, operand 0, single buffered']
    %9 = vsyncpa [#allocation4], 0
    %10 = vsyncpa [#allocation7], 0
    %11 = vsyncpa [#allocation5], 0
    // Predicated region
    $region2: #{tpu_custom_call.1} parent=1 // pred_check
      _
    $region3: #{tpu_custom_call.1} parent=1 // pred_check_branch
      %13 = sbr.rel (0) target = $region5
    $region4: #{tpu_custom_call.1} parent=1 // pred_region
      _
    $region5: #{tpu_custom_call.1} parent=1 // pred_fallthru
      _
    // Predicated region
    $region6: #{tpu_custom_call.1} parent=1 // pred_check
      _
    $region7: #{tpu_custom_call.1} parent=1 // pred_check_branch
      %15 = sbr.rel (0) target = $region9
    $region8: #{tpu_custom_call.1} parent=1 // pred_region
      %s17 = ssub.s32 256, 256
      %18 = vsyncadd [#allocation4], %s17
      %s20 = sshll.u32 [#allocation3], 4
      %s21 = int_to_ptr.vmem [resolvable:$true] %s20
      %23 = dma.hbm_to_vmem [thread:$0]  %s1, 256, %s21, [#allocation4]
    $region9: #{tpu_custom_call.1} parent=1 // pred_fallthru
      _
    // Predicated region
    $region10: #{tpu_custom_call.1} parent=1 // pred_check
      _
    $region11: #{tpu_custom_call.1} parent=1 // pred_check_branch
      %25 = sbr.rel (0) target = $region13
    $region12: #{tpu_custom_call.1} parent=1 // pred_region
      %s27 = ssub.s32 192, 192
      %28 = vsyncadd [#allocation7], %s27
      %s30 = sshll.u32 [#allocation6], 4
      %s31 = int_to_ptr.vmem [resolvable:$true] %s30
      %33 = dma.hbm_to_vmem [thread:$0]  %s2, 192, %s31, [#allocation7]
    $region13: #{tpu_custom_call.1} parent=1 // pred_fallthru
      _
    // Predicated region
    $region14: #{tpu_custom_call.1} parent=1 // pred_check
      _
    $region15: #{tpu_custom_call.1} parent=1 // pred_check_branch
      %35 = sbr.rel (0) target = $region17
    $region16: #{tpu_custom_call.1} parent=1 // pred_region
      %36 = dma.done [#allocation4], 256
    $region17: #{tpu_custom_call.1} parent=1 // pred_fallthru
      _
    // Predicated region
    $region18: #{tpu_custom_call.1} parent=1 // pred_check
      _
    $region19: #{tpu_custom_call.1} parent=1 // pred_check_branch
      %38 = sbr.rel (0) target = $region21
    $region20: #{tpu_custom_call.1} parent=1 // pred_region
      %39 = dma.done [#allocation7], 192
    $region21: #{tpu_custom_call.1} parent=1 // pred_fallthru
      _
    %s40 = sld [smem:[#allocation2]]
    %v41 = vld [vmem:[#allocation3] sm:$0xff]
    %v42 = vld [vmem:[#allocation3 + $0x8] sm:$0xff]
    %v43 = vstv %s40
    %v44 = vmul.f32 %v41, %v43
    %v45 = vmul.f32 %v42, %v43
    %46 = vst [vmem:[#allocation8] sm:$0xff] %v44
    %47 = vst [vmem:[#allocation8 + $0x8] sm:$0xff] %v45
    %v48 = vld [vmem:[#allocation6] sm:$0xff]
    %v49 = vld [vmem:[#allocation6 + $0x8] sm:$0xf]
    %50 = vst [vmem:[#allocation8 + $0x10] sm:$0xff] %v48
    %51 = vst [vmem:[#allocation8 + $0x18] sm:$0xf] %v49
    // Predicated region
    $region22: #{tpu_custom_call.1} parent=1 // pred_check
      _
    $region23: #{tpu_custom_call.1} parent=1 // pred_check_branch
      %53 = sbr.rel (0) target = $region25
    $region24: #{tpu_custom_call.1} parent=1 // pred_region
      %s55 = ssub.s32 448, 448
      %56 = vsyncadd [#allocation5], %s55
      %s58 = sshll.u32 [#allocation8], 4
      %s59 = int_to_ptr.vmem [resolvable:$true] %s58
      %61 = dma.vmem_to_hbm [thread:$0]  %s59, 448, %s3, [#allocation5]
    $region25: #{tpu_custom_call.1} parent=1 // pred_fallthru
      _
    // Predicated region
    $region26: #{tpu_custom_call.1} parent=1 // pred_check
      _
    $region27: #{tpu_custom_call.1} parent=1 // pred_check_branch
      %63 = sbr.rel (0) target = $region29
    $region28: #{tpu_custom_call.1} parent=1 // pred_region
      %64 = dma.done [#allocation5], 448
    $region29: #{tpu_custom_call.1} parent=1 // pred_fallthru
      _
    %65 = vsyncpa [#allocation4], 1
    %66 = vsyncpa [#allocation7], 1
    %67 = vsyncpa [#allocation5], 1

</llo_original>
